<compile_context>
chip_gen: v6e
topology: v6e:2x2x1
jax: 0.10.0
libtpu: 0.0.40
codegen_flags: <defaults>
</compile_context>

<pallas_src>
import functools

import jax
import jax.numpy as jnp
from jax.experimental import pallas as pl
from jax.experimental.pallas import tpu as pltpu

MARGIN = 1.0


def pair_loss_kernel(y1_ref, y2_ref, lab_ref, out_ref, *,
                     tile_rows, total_rows, num_tiles, needs_mask):
    # Upcast in-kernel (HBM reads stay in native dtype -> min HBM traffic).
    y1 = y1_ref[...].astype(jnp.float32)                     # (TB, D)
    y2 = y2_ref[...].astype(jnp.float32)                     # (TB, D)
    diff = y1 - y2                                           # VPU
    d2 = jnp.sum(diff * diff, axis=-1, keepdims=True)        # (TB, 1) XLU reduce
    d = jnp.sqrt(d2)                                         # EUP (free-ish slot)

    # Column-shaped (TB, 1) arithmetic kept minimal:
    #   label*d2 + (1-label)*hinge^2 == hinge^2 + label*(d2 - hinge^2)
    # (exactly the blended form -> soft labels still correct); the 0.5 factor
    # is folded into the wrapper-side scale.
    hinge = jnp.maximum(MARGIN - d, 0.0)
    hinge2 = hinge * hinge
    lab = lab_ref[...]                                       # (TB, 1) f32
    per_row = hinge2 + lab * (d2 - hinge2)                   # (TB, 1)

    def finalize(pr):
        # Per-tile scalar partial sum written as one unmasked, lane-dense
        # (8, 128) block: sum at [0, 0], zeros elsewhere (wrapper sums all).
        tile_sum = jnp.sum(pr)
        r = jax.lax.broadcasted_iota(jnp.int32, (8, 128), 0)
        c = jax.lax.broadcasted_iota(jnp.int32, (8, 128), 1)
        out_ref[...] = jnp.where((r == 0) & (c == 0), tile_sum, 0.0)

    if needs_mask:
        # Only the last tile pays for the padded-row mask (padded rows hold
        # garbage from the OOB part of the block; jnp.where discards it).
        last = num_tiles - 1
        rows_valid_in_last = total_rows - last * tile_rows

        @pl.when(pl.program_id(0) == last)
        def _():
            row = jax.lax.broadcasted_iota(jnp.int32, per_row.shape, 0)
            finalize(jnp.where(row < rows_valid_in_last, per_row, 0.0))

        @pl.when(pl.program_id(0) != last)
        def _():
            finalize(per_row)
    else:
        finalize(per_row)


def _vmem_capacity_bytes():
    # Per-generation VMEM capacity; conservative fallback = v7x per-TC 64 MiB.
    try:
        info = pltpu.get_tpu_info()
        cap = getattr(info, "vmem_capacity_bytes", None)
        if cap:
            return int(cap)
    except Exception:
        pass
    return 64 << 20


def _round_up(x, m):
    return -(-x // m) * m


def _pick_tile_rows(batch, feat, itemsize, budget_bytes):
    # Honest per-row VMEM footprint:
    #   4 * D * itemsize : y1 + y2 native-dtype blocks, double-buffered
    #   8 * D            : ~2 live f32 (TB, D) temporaries (upcast/diff)
    #   5 * 128 * 4      : (TB, 1) f32 label block (dbl-buffered) + ~3 live
    #                      (TB, 1) f32 column temporaries, all lane-padded
    per_row = 4 * feat * itemsize + 8 * feat + 5 * 128 * 4
    tb = (budget_bytes // max(per_row, 1)) // 512 * 512
    tb = max(512, min(16384, tb))
    if batch <= tb:
        if batch <= 2048:
            return batch          # single small tile (block == full array dim)
        # Large batch that still fits one tile: split so a 2-TensorCore chip
        # (v7x) can run both grid steps in parallel.
        return min(tb, max(512, _round_up(_round_up(batch, 2) // 2, 512)))
    return tb


def pair_loss(y1, y2, label, *, tile_rows=None):
    """y1, y2: (B, D) float/bfloat; label: (B,) or (B, 1) in [0, 1]."""
    B, D = y1.shape
    label = label.astype(jnp.float32).reshape(-1, 1)         # (B, 1), tiny

    itemsize = max(jnp.dtype(y1.dtype).itemsize, jnp.dtype(y2.dtype).itemsize)
    cap = _vmem_capacity_bytes()
    vmem_limit = min((cap * 3) // 4, 64 << 20)                # raise scoped VMEM
    budget = (vmem_limit * 3) // 5                            # headroom for runtime

    if tile_rows is None:
        tile_rows = _pick_tile_rows(B, D, itemsize, budget)
    nt = pl.cdiv(B, tile_rows)
    needs_mask = (nt * tile_rows != B)

    bytes_accessed = (
        B * D * jnp.dtype(y1.dtype).itemsize
        + B * D * jnp.dtype(y2.dtype).itemsize
        + B * 4                       # label
        + nt * 8 * 128 * 4            # per-tile scalar partials (lane-dense)
    )

    partial = pl.pallas_call(
        functools.partial(
            pair_loss_kernel,
            tile_rows=tile_rows, total_rows=B, num_tiles=nt,
            needs_mask=needs_mask),
        out_shape=jax.ShapeDtypeStruct((nt * 8, 128), jnp.float32),
        grid=(nt,),
        in_specs=[
            pl.BlockSpec((tile_rows, D), lambda i: (i, 0)),
            pl.BlockSpec((tile_rows, D), lambda i: (i, 0)),
            pl.BlockSpec((tile_rows, 1), lambda i: (i, 0)),
        ],
        out_specs=pl.BlockSpec((8, 128), lambda i: (i, 0)),
        compiler_params=pltpu.CompilerParams(
            dimension_semantics=("parallel",),
            vmem_limit_bytes=int(vmem_limit)),
        cost_estimate=pl.CostEstimate(
            flops=3 * B * D + 8 * B,
            transcendentals=B,
            bytes_accessed=int(bytes_accessed)),
    )(y1, y2, label)

    # Tiny wrapper-side reduce over per-tile scalar partials; 0.5 and the
    # mean are folded into one scale.
    return jnp.sum(partial) * (0.5 / B)


def pair_loss_ref(y1, y2, label):
    y1 = y1.astype(jnp.float32)
    y2 = y2.astype(jnp.float32)
    label = label.astype(jnp.float32).reshape(-1, 1)
    d2 = jnp.sum((y1 - y2) ** 2, axis=-1, keepdims=True)
    d = jnp.sqrt(d2)
    pos = label * d2
    neg = (1.0 - label) * jnp.square(jnp.maximum(MARGIN - d, 0.0))
    return 0.5 * jnp.mean(pos + neg)


if __name__ == "__main__":
    # Case 1: small f32 batch (single tile, block == full array dims).
    key = jax.random.PRNGKey(0)
    k1, k2, k3 = jax.random.split(key, 3)
    B, D = 8, 128
    y1 = jax.random.normal(k1, (B, D), dtype=jnp.float32)
    y2 = jax.random.normal(k2, (B, D), dtype=jnp.float32)
    label = (jax.random.uniform(k3, (B,)) > 0.5).astype(jnp.float32)

    out = pair_loss(y1, y2, label)
    jax.block_until_ready(out)
    ref = pair_loss_ref(y1, y2, label)
    assert jnp.allclose(out, ref, rtol=1e-5, atol=1e-5), (out, ref)

    # Case 2: bf16 inputs + ragged batch (exercises in-kernel upcast, the
    # multi-tile grid, the pl.when-gated padded-row mask, and the per-tile
    # scalar output blocks).
    k4, k5, k6 = jax.random.split(jax.random.PRNGKey(1), 3)
    B2, D2, TB2 = 40, 128, 16
    y1b = jax.random.normal(k4, (B2, D2), dtype=jnp.bfloat16)
    y2b = jax.random.normal(k5, (B2, D2), dtype=jnp.bfloat16)
    labelb = (jax.random.uniform(k6, (B2,)) > 0.5).astype(jnp.float32)

    outb = pair_loss(y1b, y2b, labelb, tile_rows=TB2)
    jax.block_until_ready(outb)
    refb = pair_loss_ref(y1b, y2b, labelb)
    assert jnp.allclose(outb, refb, rtol=1e-4, atol=1e-5), (outb, refb)

    print("KERNEL_OK")
</pallas_src>

<mosaic_0001>
module attributes {stable_mosaic.version = 11 : i64} {
  func.func @pair_loss_kernel(%arg0: i32, %arg1: memref<8x128xf32, #tpu.memory_space<vmem>>, %arg2: memref<8x128xf32, #tpu.memory_space<vmem>>, %arg3: memref<8x1xf32, #tpu.memory_space<vmem>>, %arg4: memref<8x128xf32, #tpu.memory_space<vmem>>) attributes {dimension_semantics = [#tpu.dimension_semantics<parallel>], iteration_bounds = array<i64: 1>, scalar_prefetch = 0 : i64, scratch_operands = 0 : i64, tpu.core_type = #tpu.core_type<tc>, window_params = [{transform_indices = @transform_0, window_bounds = array<i64: 8, 128>}, {transform_indices = @transform_1, window_bounds = array<i64: 8, 128>}, {transform_indices = @transform_2, window_bounds = array<i64: 8, 1>}, {transform_indices = @transform_3, window_bounds = array<i64: 8, 128>}]} {
    %c0 = arith.constant 0 : index
    %c0_0 = arith.constant 0 : index
    %0 = vector.load %arg1[%c0, %c0_0] : memref<8x128xf32, #tpu.memory_space<vmem>>, vector<8x128xf32>
    %c0_1 = arith.constant 0 : index
    %c0_2 = arith.constant 0 : index
    %1 = vector.load %arg2[%c0_1, %c0_2] : memref<8x128xf32, #tpu.memory_space<vmem>>, vector<8x128xf32>
    %2 = arith.subf %0, %1 : vector<8x128xf32>
    %3 = arith.mulf %2, %2 : vector<8x128xf32>
    %cst = arith.constant dense<0.000000e+00> : vector<8xf32>
    %4 = vector.multi_reduction <add>, %3, %cst [1] : vector<8x128xf32> to vector<8xf32>
    %5 = vector.shape_cast %4 : vector<8xf32> to vector<8x1xf32>
    %6 = math.sqrt %5 : vector<8x1xf32>
    %cst_3 = arith.constant 1.000000e+00 : f32
    %7 = vector.broadcast %cst_3 : f32 to vector<8x1xf32>
    %8 = arith.subf %7, %6 : vector<8x1xf32>
    %cst_4 = arith.constant 0.000000e+00 : f32
    %9 = vector.broadcast %cst_4 : f32 to vector<8x1xf32>
    %10 = arith.maximumf %8, %9 : vector<8x1xf32>
    %11 = arith.mulf %10, %10 : vector<8x1xf32>
    %c0_5 = arith.constant 0 : index
    %c0_6 = arith.constant 0 : index
    %12 = vector.load %arg3[%c0_5, %c0_6] : memref<8x1xf32, #tpu.memory_space<vmem>>, vector<8x1xf32>
    %13 = arith.subf %5, %11 : vector<8x1xf32>
    %14 = arith.mulf %12, %13 : vector<8x1xf32>
    %15 = arith.addf %11, %14 : vector<8x1xf32>
    %16 = vector.shape_cast %15 : vector<8x1xf32> to vector<1x8x1xf32>
    %cst_7 = arith.constant dense<0.000000e+00> : vector<1xf32>
    %17 = vector.multi_reduction <add>, %16, %cst_7 [1, 2] : vector<1x8x1xf32> to vector<1xf32>
    %18 = vector.shape_cast %17 : vector<1xf32> to vector<1x1x1xf32>
    %19 = vector.extract %18[0, 0, 0] : f32 from vector<1x1x1xf32>
    %20 = tpu.iota {dimensions = array<i32: 0>} : vector<8x128xi32>
    %21 = tpu.iota {dimensions = array<i32: 1>} : vector<8x128xi32>
    %c0_i32 = arith.constant 0 : i32
    %22 = vector.broadcast %c0_i32 : i32 to vector<8x128xi32>
    %23 = arith.cmpi eq, %20, %22 : vector<8x128xi32>
    %c0_i32_8 = arith.constant 0 : i32
    %24 = vector.broadcast %c0_i32_8 : i32 to vector<8x128xi32>
    %25 = arith.cmpi eq, %21, %24 : vector<8x128xi32>
    %26 = arith.andi %23, %25 : vector<8x128xi1>
    %cst_9 = arith.constant 0.000000e+00 : f32
    %27 = vector.broadcast %19 : f32 to vector<8x128xf32>
    %28 = vector.broadcast %cst_9 : f32 to vector<8x128xf32>
    %29 = arith.select %26, %27, %28 : vector<8x128xi1>, vector<8x128xf32>
    %c0_10 = arith.constant 0 : index
    %c0_11 = arith.constant 0 : index
    %30 = vector.load %arg4[%c0_10, %c0_11] : memref<8x128xf32, #tpu.memory_space<vmem>>, vector<8x128xf32>
    tpu.vector_store %arg4[%c0_10, %c0_11], %29 {strides = array<i32>} : memref<8x128xf32, #tpu.memory_space<vmem>>, vector<8x128xf32>,
    return
  }
  func.func @transform_0(%arg0: i32) -> (i32, i32) {
    %c0_i32 = arith.constant 0 : i32
    %c0_i32_0 = arith.constant 0 : i32
    return %arg0, %c0_i32 : i32, i32
  }
  func.func @transform_1(%arg0: i32) -> (i32, i32) {
    %c0_i32 = arith.constant 0 : i32
    %c0_i32_0 = arith.constant 0 : i32
    return %arg0, %c0_i32 : i32, i32
  }
  func.func @transform_2(%arg0: i32) -> (i32, i32) {
    %c0_i32 = arith.constant 0 : i32
    %c0_i32_0 = arith.constant 0 : i32
    return %arg0, %c0_i32 : i32, i32
  }
  func.func @transform_3(%arg0: i32) -> (i32, i32) {
    %c0_i32 = arith.constant 0 : i32
    %c0_i32_0 = arith.constant 0 : i32
    return %arg0, %c0_i32 : i32, i32
  }
}

</mosaic_0001>

<llo_original>
// kernel: tpu_custom_call.1
$region0: #{tpu_custom_call.1}
  #allocation0 [shape = 'u32[]', space=smem, size = 0x4, offset = 0x4, fixed_abs, tag = 'smem constant byte address 0x4 - core index']
  #allocation1 [shape = 'u32[144,128]{1,0:T(1,128)}', space=vmem, size = 0x12000, scoped, tag = 'internal scratch']
  %s0 = inlined_call_operand.vmem [shape: f32[8,128], index: 0, kind: input, shape index: {}]
  %s1 = inlined_call_operand.hbm [shape: f32[8,128], index: 1, kind: input, shape index: {}]
  %s2 = inlined_call_operand.vmem [shape: f32[8,1], index: 2, kind: input, shape index: {}]
  %s3 = inlined_call_operand.hbm [shape: f32[8,128], index: 3, kind: output, shape index: {}]
  %s4 = sld [smem:[#allocation0]]
  $region26: #{tpu_custom_call.1} parent=0
    _
  %s6 = ssub.s32 1, %s4
  %s7 = scalar_select 0, %s6, %s4
  $region1: #{tpu_custom_call.1} parent=0
    #allocation2 [shape = 'u8[4096]{0}', space=vmem, size = 0x1000, scoped, tag = 'input window, operand 1, single buffered']
    #allocation3 [shape = 's32[1]{0}', space=sflag, size = 0x4, scoped, tag = 'scoped memory for tpu_custom_call.1']
    #allocation4 [shape = 's32[1]{0}', space=sflag, size = 0x4, scoped, tag = 'scoped memory for tpu_custom_call.1']
    #allocation5 [shape = 'u8[4096]{0}', space=vmem, size = 0x1000, scoped, tag = 'output window, operand 0, single buffered']
    %8 = vsyncpa [#allocation3], 0
    %9 = vsyncpa [#allocation4], 0
    // Predicated region
    $region2: #{tpu_custom_call.1} parent=1 // pred_check
      _
    $region3: #{tpu_custom_call.1} parent=1 // pred_check_branch
      %11 = sbr.rel (0) target = $region5
    $region4: #{tpu_custom_call.1} parent=1 // pred_region
      _
    $region5: #{tpu_custom_call.1} parent=1 // pred_fallthru
      _
    // Predicated region
    $region6: #{tpu_custom_call.1} parent=1 // pred_check
      _
    $region7: #{tpu_custom_call.1} parent=1 // pred_check_branch
      %13 = sbr.rel (0) target = $region9
    $region8: #{tpu_custom_call.1} parent=1 // pred_region
      %s15 = ssub.s32 128, 128
      %16 = vsyncadd [#allocation3], %s15
      %s18 = sshll.u32 [#allocation2], 4
      %s19 = int_to_ptr.vmem [resolvable:$true] %s18
      %21 = dma.hbm_to_vmem [thread:$0]  %s1, 128, %s19, [#allocation3]
    $region9: #{tpu_custom_call.1} parent=1 // pred_fallthru
      _
    // Predicated region
    $region10: #{tpu_custom_call.1} parent=1 // pred_check
      _
    $region11: #{tpu_custom_call.1} parent=1 // pred_check_branch
      %23 = sbr.rel (0) target = $region13
    $region12: #{tpu_custom_call.1} parent=1 // pred_region
      _
    $region13: #{tpu_custom_call.1} parent=1 // pred_fallthru
      _
    // Predicated region
    $region14: #{tpu_custom_call.1} parent=1 // pred_check
      _
    $region15: #{tpu_custom_call.1} parent=1 // pred_check_branch
      %25 = sbr.rel (0) target = $region17
    $region16: #{tpu_custom_call.1} parent=1 // pred_region
      %26 = dma.done [#allocation3], 128
    $region17: #{tpu_custom_call.1} parent=1 // pred_fallthru
      _
    %v27 = vld [vmem:[%s0] sm:$0xff]
    %v28 = vld [vmem:[#allocation2] sm:$0xff]
    %v29 = vsub.f32 %v27, %v28
    %v30 = vmul.f32 %v29, %v29
    %31 = vadd.xlane.f32.xlu0 %v30
    %v32 = vpop.xlane.xlu0 %31
    %v33 = vrsqrt.pop %v32
    %v34 = vmul.f32 %v32, %v33
    %vm35 = vcmp.eq.f32.partialorder %v32, inf
    %v36 = vsel %vm35, %v32, %v34
    %vm37 = vcmp.eq.f32.partialorder %v32, 0.0
    %v38 = vand.u32 %v32, 2147483648
    %v39 = vsel %vm37, %v38, %v36
    %v40 = vsub.f32 1.0, %v39
    %v41 = vmax.f32 %v40, 0.0
    %v42 = vmul.f32 %v41, %v41
    %v43 = vld [vmem:[%s2] sm:$0xff]
    %v44 = vsub.f32 %v32, %v42
    %v45 = vmul.f32 %v43, %v44
    %v46 = vadd.f32 %v42, %v45
    %vm47 = vcmask 7168
    %v48 = vsel %vm47, %v46, 0.0
    %49 = vadd.xlane.f32.xlu0 %v48
    %v50 = vpop.xlane.xlu0 %49
    %v51 = vrot.slane %v50, 4
    %v52 = vadd.f32 %v50, %v51
    %v53 = vrot.slane %v52, 2
    %v54 = vadd.f32 %v52, %v53
    %v55 = vrot.slane %v54, 1
    %v56 = vadd.f32 %v54, %v55
    %s57 = vtos %v56
    %v58 = vlaneseq
    %v59 = vshrl.u32 %v58, 7
    %v60 = vlaneseq
    %v61 = vand.u32 %v60, 127
    %vm62 = vcmp.eq.s32.totalorder %v59, 0
    %vm63 = vcmp.eq.s32.totalorder %v61, 0
    %vm64 = vmand %vm62, %vm63
    %v65 = vstv %s57
    %v66 = vsel %vm64, %v65, 0.0
    %67 = vst [vmem:[#allocation5] sm:$0xff] %v66
    // Predicated region
    $region18: #{tpu_custom_call.1} parent=1 // pred_check
      _
    $region19: #{tpu_custom_call.1} parent=1 // pred_check_branch
      %69 = sbr.rel (0) target = $region21
    $region20: #{tpu_custom_call.1} parent=1 // pred_region
      %s71 = ssub.s32 128, 128
      %72 = vsyncadd [#allocation4], %s71
      %s74 = sshll.u32 [#allocation5], 4
      %s75 = int_to_ptr.vmem [resolvable:$true] %s74
      %77 = dma.vmem_to_hbm [thread:$0]  %s75, 128, %s3, [#allocation4]
    $region21: #{tpu_custom_call.1} parent=1 // pred_fallthru
      _
    // Predicated region
    $region22: #{tpu_custom_call.1} parent=1 // pred_check
      _
    $region23: #{tpu_custom_call.1} parent=1 // pred_check_branch
      %79 = sbr.rel (0) target = $region25
    $region24: #{tpu_custom_call.1} parent=1 // pred_region
      %80 = dma.done [#allocation4], 128
    $region25: #{tpu_custom_call.1} parent=1 // pred_fallthru
      _
    %81 = vsyncpa [#allocation3], 1
    %82 = vsyncpa [#allocation4], 1

</llo_original>
